<compile_context>
chip_gen: v6e
topology: v6e:2x2x1
jax: 0.10.0
libtpu: 0.0.40
codegen_flags: <defaults>
</compile_context>

<pallas_src>
import jax
import jax.numpy as jnp
from jax.experimental import pallas as pl
from jax.experimental.pallas import tpu as pltpu


def _round_up(x, m):
    return (x + m - 1) // m * m


def _sublane_multiple(dtype):
    # Second-minor tiling multiple per dtype (f32: 8, bf16/f16: 16, int8/fp8: 32).
    return {4: 8, 2: 16, 1: 32}.get(jnp.dtype(dtype).itemsize, 8)


def _vmem_limit_bytes():
    """Generation-aware scoped-VMEM limit: ~3/4 of physical, capped at 100 MiB
    (v7x: 64 MiB phys -> 48 MiB; v5e/v6e: 128 MiB phys -> 96 MiB)."""
    phys = 64 << 20  # conservative default (v7x-sized VMEM)
    try:
        info = pltpu.get_tpu_info()
        phys = int(getattr(info, "vmem_capacity_bytes", phys)) or phys
    except Exception:
        pass
    return int(max(32 << 20, min(phys * 3 // 4, 100 << 20)))


def _pick_batch_tile(b_pad, per_row_bytes, sublane, row_budget_bytes, min_steps=4):
    """Largest batch tile (multiple of `sublane`, dividing b_pad) such that the
    per-tile VMEM footprint fits the budget AND the grid keeps >= min_steps
    steps when the batch allows it (DMA/compute overlap + both v7x cores)."""
    tb_vmem = max(sublane, (row_budget_bytes // max(per_row_bytes, 1)) // sublane * sublane)
    tb_steps = max(sublane, (b_pad // min_steps) // sublane * sublane)
    tb = min(tb_vmem, tb_steps, b_pad)
    while b_pad % tb != 0:
        tb -= sublane
    return tb


def _fused_kernel(x_ref, wf_ref, o_ref):
    # x_ref:  VMEM (TB, N*N)   flattened batch tile of input matrices
    # wf_ref: VMEM (O_pad, N*N) fused weight Wf[o, p*N+m] = W[o,p]*wbar[m] (resident)
    # o_ref:  VMEM (TB, O_pad)  lane-dense output tile
    o_ref[...] = jax.lax.dot_general(
        x_ref[...], wf_ref[...],
        dimension_numbers=(((1,), (1,)), ((), ())),   # contract last dims, no .T
        preferred_element_type=jnp.float32,           # MXU, f32 accumulation
    ).astype(o_ref.dtype)


def _two_stage_kernel(x_ref, wbar_ref, w_ref, o_ref):
    # Fallback for large N (fused weight too big for VMEM).
    # x_ref: (TB, N, N); wbar_ref: (1, N) f32; w_ref: (O_pad, N) f32; o_ref: (TB, O_pad)
    xv = x_ref[...].astype(jnp.float32)
    v = jnp.sum(xv * wbar_ref[...], axis=-1)          # (TB, N): VPU mul + lane reduce, f32
    o_ref[...] = jax.lax.dot_general(
        v, w_ref[...],
        dimension_numbers=(((1,), (1,)), ((), ())),
        preferred_element_type=jnp.float32,
    ).astype(o_ref.dtype)


def parametric_vectorize(x, weight, *, batch_tile=None, min_steps=4):
    """Forward of ParametricVectorize. x: (B, N, N); weight: (O, N) -> (B, O)."""
    B, N, N2 = x.shape
    O, Nw = weight.shape
    assert N == N2 and N == Nw, "input must be (B, N, N) and weight (O, N)"

    itemsize = jnp.dtype(x.dtype).itemsize
    sublane = _sublane_multiple(x.dtype)
    b_pad = max(_round_up(B, sublane), sublane)
    o_pad = _round_up(O, 128)              # lane-dense output stores
    k = N * N
    k_lanes = _round_up(k, 128)            # lane-padded flattened contraction dim
    n_lanes = _round_up(N, 128)

    vmem_limit = _vmem_limit_bytes()
    headroom = 2 << 20                     # Mosaic internal scratch, misc.

    # Weight preprocessing — hoisted out of the kernel, f32 for accuracy.
    w32 = weight.astype(jnp.float32)
    wbar = jnp.mean(w32, axis=0)                                   # (N,) mean over TRUE O rows
    w_pad = jnp.zeros((o_pad, N), jnp.float32).at[:O, :].set(w32)  # zero rows -> zero out cols

    # Zero-pad the batch so sublane-aligned tiles divide it cleanly.
    if b_pad != B:
        x = jnp.pad(x, ((0, b_pad - B), (0, 0), (0, 0)))

    # Padding-aware VMEM footprints (bytes), counting 2 pipeline buffers each.
    wf_bytes = 2 * o_pad * k_lanes * itemsize                 # fused weight (resident)
    x_row_fused = k_lanes * itemsize                          # per batch row, one buffer
    x_row_2stage = _round_up(N, 8) * n_lanes * itemsize
    out_row = o_pad * itemsize
    w2_bytes = 2 * (o_pad * n_lanes * 4 + 8 * 128 * 4)        # fallback weights (f32), small

    use_fused = (
        wf_bytes + 2 * sublane * (x_row_fused + out_row) + headroom <= vmem_limit
    )

    if use_fused:
        # Wfused[o, p*N+m] = W[o,p] * wbar[m]; cast to x dtype (bf16 goes to MXU natively).
        wf = (w_pad[:, :, None] * wbar[None, None, :]).reshape(o_pad, k).astype(x.dtype)
        x_flat = x.reshape(b_pad, k)

        per_row = 2 * (x_row_fused + out_row)
        row_budget = vmem_limit - wf_bytes - headroom
        tb = batch_tile if batch_tile is not None else _pick_batch_tile(
            b_pad, per_row, sublane, row_budget, min_steps)
        assert b_pad % tb == 0 and tb % sublane == 0

        cost = pl.CostEstimate(
            flops=2 * b_pad * k * o_pad,
            transcendentals=0,
            bytes_accessed=(b_pad * k + o_pad * k + b_pad * o_pad) * itemsize,
        )
        out = pl.pallas_call(
            _fused_kernel,
            out_shape=jax.ShapeDtypeStruct((b_pad, o_pad), x.dtype),
            grid=(b_pad // tb,),
            in_specs=[
                pl.BlockSpec((tb, k), lambda i: (i, 0)),        # x batch tile (lane-dense)
                pl.BlockSpec((o_pad, k), lambda i: (0, 0)),     # fused weight, resident
            ],
            out_specs=pl.BlockSpec((tb, o_pad), lambda i: (i, 0)),
            compiler_params=pltpu.CompilerParams(
                dimension_semantics=("parallel",),              # batch tiles independent
                vmem_limit_bytes=vmem_limit,
            ),
            cost_estimate=cost,
        )(x_flat, wf)
    else:
        # Large-N fallback: wbar precomputed (no per-step XLU reduce of W),
        # VPU multiply + lane reduce + small MXU projection, f32 accumulation.
        # TODO(synk): for huge N where even a one-sublane batch tile overflows
        # VMEM, add a second "arbitrary" grid axis tiling the row dim with a
        # pl.when(p == 0) accumulator-init pattern.
        per_row = 2 * (x_row_2stage + out_row)
        row_budget = vmem_limit - w2_bytes - headroom
        tb = batch_tile if batch_tile is not None else _pick_batch_tile(
            b_pad, per_row, sublane, row_budget, min_steps)
        assert b_pad % tb == 0 and tb % sublane == 0

        cost = pl.CostEstimate(
            flops=2 * b_pad * N * N + 2 * b_pad * N * o_pad,
            transcendentals=0,
            bytes_accessed=b_pad * N * N * itemsize
            + (o_pad * N + N) * 4
            + b_pad * o_pad * itemsize,
        )
        out = pl.pallas_call(
            _two_stage_kernel,
            out_shape=jax.ShapeDtypeStruct((b_pad, o_pad), x.dtype),
            grid=(b_pad // tb,),
            in_specs=[
                pl.BlockSpec((tb, N, N), lambda i: (i, 0, 0)),  # x batch tile
                pl.BlockSpec((1, N), lambda i: (0, 0)),         # wbar, resident
                pl.BlockSpec((o_pad, N), lambda i: (0, 0)),     # padded weight, resident
            ],
            out_specs=pl.BlockSpec((tb, o_pad), lambda i: (i, 0)),
            compiler_params=pltpu.CompilerParams(
                dimension_semantics=("parallel",),
                vmem_limit_bytes=vmem_limit,
            ),
            cost_estimate=cost,
        )(x, wbar.reshape(1, N), w_pad)

    return out[:B, :O]


if __name__ == "__main__":
    key = jax.random.PRNGKey(0)
    kx, kw = jax.random.split(key)

    B, N, O = 16, 16, 32          # batch=16, input_size=16, output_size=32
    x = jax.random.normal(kx, (B, N, N), dtype=jnp.float32)
    # The module initializes weight to ones (then trains it); a random weight
    # exercises the full contraction rather than a degenerate all-ones case.
    weight = jax.random.normal(kw, (O, N), dtype=jnp.float32)

    out = parametric_vectorize(x, weight)      # auto tile: tb=8 -> 2 parallel grid steps
    out = jax.block_until_ready(out)

    # Pure-JAX reference with the original op structure: W @ x @ W.T, mean over dim 2.
    t = jnp.einsum("on,bnm->bom", weight, x)
    y = jnp.einsum("bom,jm->boj", t, weight)
    ref = jnp.mean(y, axis=2)

    assert out.shape == (B, O)
    max_err = float(jnp.max(jnp.abs(out - ref)))
    assert jnp.allclose(out, ref, atol=1e-3, rtol=1e-3), max_err

    print("KERNEL_OK")
</pallas_src>

<mosaic_0001>
module attributes {stable_mosaic.version = 11 : i64} {
  func.func @_fused_kernel(%arg0: i32, %arg1: memref<8x256xf32, #tpu.memory_space<vmem>>, %arg2: memref<128x256xf32, #tpu.memory_space<vmem>>, %arg3: memref<8x128xf32, #tpu.memory_space<vmem>>) attributes {dimension_semantics = [#tpu.dimension_semantics<parallel>], iteration_bounds = array<i64: 2>, scalar_prefetch = 0 : i64, scratch_operands = 0 : i64, tpu.core_type = #tpu.core_type<tc>, window_params = [{transform_indices = @transform_0, window_bounds = array<i64: 8, 256>}, {pipeline_mode = #tpu.pipeline_mode<synchronous>, transform_indices = @transform_1, window_bounds = array<i64: 128, 256>}, {transform_indices = @transform_2, window_bounds = array<i64: 8, 128>}]} {
    %c0 = arith.constant 0 : index
    %c0_0 = arith.constant 0 : index
    %0 = vector.load %arg1[%c0, %c0_0] : memref<8x256xf32, #tpu.memory_space<vmem>>, vector<8x256xf32>
    %c0_1 = arith.constant 0 : index
    %c0_2 = arith.constant 0 : index
    %1 = vector.load %arg2[%c0_1, %c0_2] : memref<128x256xf32, #tpu.memory_space<vmem>>, vector<128x256xf32>
    %cst = arith.constant dense<0.000000e+00> : vector<8x128xf32>
    %2 = tpu.matmul %0, %1, %cst {dimension_numbers = #tpu.dot_dimension_numbers<[1], [1], [0], [0], [0, 0, 1, 0], [], []>} : vector<8x256xf32>, vector<128x256xf32>, vector<8x128xf32> -> vector<8x128xf32>
    %c0_3 = arith.constant 0 : index
    %c0_4 = arith.constant 0 : index
    %3 = vector.load %arg3[%c0_3, %c0_4] : memref<8x128xf32, #tpu.memory_space<vmem>>, vector<8x128xf32>
    tpu.vector_store %arg3[%c0_3, %c0_4], %2 {strides = array<i32>} : memref<8x128xf32, #tpu.memory_space<vmem>>, vector<8x128xf32>,
    return
  }
  func.func @transform_0(%arg0: i32) -> (i32, i32) {
    %c0_i32 = arith.constant 0 : i32
    %c0_i32_0 = arith.constant 0 : i32
    return %arg0, %c0_i32 : i32, i32
  }
  func.func @transform_1(%arg0: i32) -> (i32, i32) {
    %c0_i32 = arith.constant 0 : i32
    %c0_i32_0 = arith.constant 0 : i32
    %c0_i32_1 = arith.constant 0 : i32
    return %c0_i32, %c0_i32_0 : i32, i32
  }
  func.func @transform_2(%arg0: i32) -> (i32, i32) {
    %c0_i32 = arith.constant 0 : i32
    %c0_i32_0 = arith.constant 0 : i32
    return %arg0, %c0_i32 : i32, i32
  }
}

</mosaic_0001>

<llo_original>
// kernel: tpu_custom_call.1
$region0: #{tpu_custom_call.1}
  #allocation0 [shape = 'u32[]', space=smem, size = 0x4, offset = 0x4, fixed_abs, tag = 'smem constant byte address 0x4 - core index']
  #allocation1 [shape = 'u32[144,128]{1,0:T(1,128)}', space=vmem, size = 0x12000, scoped, tag = 'internal scratch']
  %s0 = inlined_call_operand.hbm [shape: f32[16,256], index: 0, kind: input, shape index: {}]
  %s1 = inlined_call_operand.hbm [shape: f32[128,256], index: 1, kind: input, shape index: {}]
  %s2 = inlined_call_operand.hbm [shape: f32[16,128], index: 2, kind: output, shape index: {}]
  %s3 = sld [smem:[#allocation0]]
  $region49: #{tpu_custom_call.1} parent=0
    _
  %s5 = ssub.s32 1, %s3
  %s6 = scalar_select 0, %s5, %s3
  $region1: #{tpu_custom_call.1} parent=0
    #allocation2 [shape = 'u8[16384]{0}', space=vmem, size = 0x4000, scoped, tag = 'input window, operand 0']
    #allocation3 [shape = 's32[2]{0}', space=sflag, size = 0x8, scoped, tag = 'scoped memory for tpu_custom_call.1']
    #allocation4 [shape = 's32[2]{0}', space=sflag, size = 0x8, scoped, tag = 'scoped memory for tpu_custom_call.1']
    #allocation5 [shape = 'u8[131072]{0}', space=vmem, size = 0x20000, scoped, tag = 'input window, operand 1, single buffered']
    #allocation6 [shape = 's32[1]{0}', space=sflag, size = 0x4, scoped, tag = 'scoped memory for tpu_custom_call.1']
    #allocation7 [shape = 'u8[8192]{0}', space=vmem, size = 0x2000, scoped, tag = 'output window, operand 0']
    %7 = vsyncpa [#allocation3], 0
    %s8 = scalar_lea.sflag [#allocation3], 1
    %9 = vsyncpa %s8, 0
    %10 = vsyncpa [#allocation6], 0
    %11 = vsyncpa [#allocation4], 0
    %s12 = scalar_lea.sflag [#allocation4], 1
    %13 = vsyncpa %s12, 0
    loop: start=0, step=1, limit=4
    $region2: #{tpu_custom_call.1} parent=1 // loop_pre_header
      _
    $region3: #{tpu_custom_call.1} parent=1 // loop_header
      %s15 = sphi 0, %s19
      %p16 = scmp.ge.s32.totalorder %s15, 4
      %s25 = sphi 0, %s27
      %s28 = sphi 0, %s25
      %s29 = sphi 0, %s28
      %s45 = sphi 0, %s29
      %s49 = sphi 0, %s49
      %s51 = sphi 0, %s49
      %s52 = sphi 0, %s51
      %s66 = sphi 0, %s52
      %s72 = sphi 0, %s74
      %s75 = sphi 0, %s72
      %s76 = sphi 0, %s75
      %s92 = sphi 0, %s76
    $region4: #{tpu_custom_call.1} parent=1 // loop_header_branch
      %18 = sbr.rel (%p16) target = $region8
    $region5: #{tpu_custom_call.1} parent=1 // loop_body
      %s20 = ssub.s32 %s15, 1
      %s21 = ssub.s32 %s15, 2
      %s22 = sadd.s32 %s15, 1
      %s23 = ssub.s32 %s15, %s22
      %p24 = scmp.eq.s32.totalorder %s23, 0
      %s26 = sadd.s32 %s25, 1
      %s27 = scalar_select %p24, %s25, %s26
      %p30 = pneg %p24
      %p31 = scmp.eq.s32.totalorder %s15, 1
      %p32 = por %p30, %p31
      %p33 = scmp.ne.s32.totalorder %s25, %s28
      %p34 = scmp.eq.s32.totalorder %s15, 0
      %p35 = por %p33, %p34
      %p36 = scmp.ne.s32.totalorder %s25, %s28
      %p37 = scmp.eq.s32.totalorder %s20, 1
      %p38 = por %p36, %p37
      %p39 = scmp.ne.s32.totalorder %s28, %s29
      %p40 = scmp.eq.s32.totalorder %s20, 0
      %p41 = por %p39, %p40
      %p42 = scmp.ne.s32.totalorder %s28, %s29
      %p43 = scmp.eq.s32.totalorder %s21, 1
      %p44 = por %p42, %p43
      %p46 = scmp.ne.s32.totalorder %s29, %s45
      %p47 = scmp.eq.s32.totalorder %s21, 0
      %p48 = por %p46, %p47
      %s50 = sadd.s32 %s49, 1
      %p53 = scmp.eq.s32.totalorder %s15, 1
      %p54 = scmp.ne.s32.totalorder %s49, %s51
      %p55 = scmp.eq.s32.totalorder %s15, 0
      %p56 = por %p54, %p55
      %p57 = scmp.ne.s32.totalorder %s49, %s51
      %p58 = scmp.eq.s32.totalorder %s20, 1
      %p59 = por %p57, %p58
      %p60 = scmp.ne.s32.totalorder %s51, %s52
      %p61 = scmp.eq.s32.totalorder %s20, 0
      %p62 = por %p60, %p61
      %p63 = scmp.ne.s32.totalorder %s51, %s52
      %p64 = scmp.eq.s32.totalorder %s21, 1
      %p65 = por %p63, %p64
      %p67 = scmp.ne.s32.totalorder %s52, %s66
      %p68 = scmp.eq.s32.totalorder %s21, 0
      %p69 = por %p67, %p68
      %s70 = ssub.s32 %s15, %s22
      %p71 = scmp.eq.s32.totalorder %s70, 0
      %s73 = sadd.s32 %s72, 1
      %s74 = scalar_select %p71, %s72, %s73
      %p77 = pneg %p71
      %p78 = scmp.eq.s32.totalorder %s15, 1
      %p79 = por %p77, %p78
      %p80 = scmp.ne.s32.totalorder %s72, %s75
      %p81 = scmp.eq.s32.totalorder %s15, 0
      %p82 = por %p80, %p81
      %p83 = scmp.ne.s32.totalorder %s72, %s75
      %p84 = scmp.eq.s32.totalorder %s20, 1
      %p85 = por %p83, %p84
      %p86 = scmp.ne.s32.totalorder %s75, %s76
      %p87 = scmp.eq.s32.totalorder %s20, 0
      %p88 = por %p86, %p87
      %p89 = scmp.ne.s32.totalorder %s75, %s76
      %p90 = scmp.eq.s32.totalorder %s21, 1
      %p91 = por %p89, %p90
      %p93 = scmp.ne.s32.totalorder %s76, %s92
      %p94 = scmp.eq.s32.totalorder %s21, 0
      %p95 = por %p93, %p94
      %p96 = scmp.le.s32.totalorder 1, %s15
      %p97 = scmp.lt.s32.totalorder %s15, 3
      %p98 = pnand %p96, %p97
      %p99 = pneg %p98
      // Predicated region
      $region9: #{tpu_custom_call.1} parent=5 // pred_check
        _
      $region10: #{tpu_custom_call.1} parent=5 // pred_check_branch
        %101 = sbr.rel (%p98) target = $region12
      $region11: #{tpu_custom_call.1} parent=5 // pred_region
        %s102 = ssub.s32 %s15, 1
        // Predicated region
        $region13: #{tpu_custom_call.1} parent=11 // pred_check
          %p103 = pneg %p62
        $region14: #{tpu_custom_call.1} parent=11 // pred_check_branch
          %105 = sbr.rel (%p103) target = $region16
        $region15: #{tpu_custom_call.1} parent=11 // pred_region
          %s107 = ssub.s32 4096, 4096
          %108 = vsyncadd [#allocation6], %s107
          %s109 = sshll.u32 [#allocation5], 4
          %s110 = int_to_ptr.vmem [resolvable:$true] %s109
          %115 = dma.hbm_to_vmem [thread:$0]  %s1, 4096, %s110, [#allocation6], 256, 256, 16
        $region16: #{tpu_custom_call.1} parent=11 // pred_fallthru
          _
      $region12: #{tpu_custom_call.1} parent=5 // pred_fallthru
        _
      %p116 = scmp.lt.s32.totalorder %s15, 2
      // Predicated region
      $region17: #{tpu_custom_call.1} parent=5 // pred_check
        %p117 = pneg %p116
      $region18: #{tpu_custom_call.1} parent=5 // pred_check_branch
        %119 = sbr.rel (%p117) target = $region20
      $region19: #{tpu_custom_call.1} parent=5 // pred_region
        // Predicated region
        $region21: #{tpu_custom_call.1} parent=19 // pred_check
          %p120 = pneg %p35
        $region22: #{tpu_custom_call.1} parent=19 // pred_check_branch
          %122 = sbr.rel (%p120) target = $region24
        $region23: #{tpu_custom_call.1} parent=19 // pred_region
          %s123 = sand.u32 %s25, 1
          %s124 = scalar_lea.sflag [#allocation3], %s123
          %s125 = sand.u32 %s25, 1
          %s126 = smul.addr %s125, 16
          %s127 = scalar_lea.vmem [#allocation2], %s126
          %s129 = ssub.s32 256, 256
          %130 = vsyncadd %s124, %s129
          %s131 = smul.addr %s15, 2
          %s132 = smul.addr %s131, 128
          %s133 = scalar_lea.hbm %s0, %s132
          %s135 = sshll.u32 %s127, 4
          %s136 = int_to_ptr.vmem [resolvable:$true] %s135
          %138 = dma.hbm_to_vmem [thread:$0]  %s133, 256, %s136, %s124
        $region24: #{tpu_custom_call.1} parent=19 // pred_fallthru
          _
      $region20: #{tpu_custom_call.1} parent=5 // pred_fallthru
        _
      %p139 = scmp.le.s32.totalorder 1, %s15
      %p140 = scmp.lt.s32.totalorder %s15, 3
      %p141 = pnand %p139, %p140
      %p142 = pneg %p141
      // Predicated region
      $region25: #{tpu_custom_call.1} parent=5 // pred_check
        _
      $region26: #{tpu_custom_call.1} parent=5 // pred_check_branch
        %144 = sbr.rel (%p141) target = $region28
      $region27: #{tpu_custom_call.1} parent=5 // pred_region
        %s145 = ssub.s32 %s15, 1
        %s146 = sand.u32 %s28, 1
        %s147 = scalar_lea.sflag [#allocation3], %s146
        %s148 = sand.u32 %s28, 1
        %s149 = smul.addr %s148, 16
        %s150 = scalar_lea.vmem [#allocation2], %s149
        // Predicated region
        $region29: #{tpu_custom_call.1} parent=27 // pred_check
          %p151 = pneg %p41
        $region30: #{tpu_custom_call.1} parent=27 // pred_check_branch
          %153 = sbr.rel (%p151) target = $region32
        $region31: #{tpu_custom_call.1} parent=27 // pred_region
          %154 = dma.done %s147, 256
        $region32: #{tpu_custom_call.1} parent=27 // pred_fallthru
          _
        // Predicated region
        $region33: #{tpu_custom_call.1} parent=27 // pred_check
          %p155 = pneg %p62
        $region34: #{tpu_custom_call.1} parent=27 // pred_check_branch
          %157 = sbr.rel (%p155) target = $region36
        $region35: #{tpu_custom_call.1} parent=27 // pred_region
          %158 = dma.done [#allocation6], 4096
        $region36: #{tpu_custom_call.1} parent=27 // pred_fallthru
          _
        %s159 = sand.u32 %s28, 1
        %s160 = scalar_lea.sflag [#allocation3], %s159
        %s161 = sand.u32 %s28, 1
        %s162 = smul.addr %s161, 16
        %s163 = scalar_lea.vmem [#allocation2], %s162
        %p164 = pneg %p41
        %p165 = pneg %p38
        %p166 = pneg %p62
        %p167 = pneg %p59
        %p168 = pneg %p88
        %p169 = pneg %p85
        %s170 = sand.u32 %s75, 1
        %s171 = scalar_lea.sflag [#allocation4], %s170
        %s172 = sand.u32 %s75, 1
        %s173 = smul.addr %s172, 8
        %s174 = scalar_lea.vmem [#allocation7], %s173
        %v175 = vld [vmem:[%s150] sm:$0xff]
        %v176 = vld [vmem:[%s150 + $0x8] sm:$0xff]
        %v177 = vld [vmem:[#allocation5] sm:$0xff]
        %v178 = vld [vmem:[#allocation5 + $0x8] sm:$0xff]
        %v179 = vld [vmem:[#allocation5 + $0x10] sm:$0xff]
        %v180 = vld [vmem:[#allocation5 + $0x18] sm:$0xff]
        %v181 = vld [vmem:[#allocation5 + $0x20] sm:$0xff]
        %v182 = vld [vmem:[#allocation5 + $0x28] sm:$0xff]
        %v183 = vld [vmem:[#allocation5 + $0x30] sm:$0xff]
        %v184 = vld [vmem:[#allocation5 + $0x38] sm:$0xff]
        %v185 = vld [vmem:[#allocation5 + $0x40] sm:$0xff]
        %v186 = vld [vmem:[#allocation5 + $0x48] sm:$0xff]
        %v187 = vld [vmem:[#allocation5 + $0x50] sm:$0xff]
        %v188 = vld [vmem:[#allocation5 + $0x58] sm:$0xff]
        %v189 = vld [vmem:[#allocation5 + $0x60] sm:$0xff]
        %v190 = vld [vmem:[#allocation5 + $0x68] sm:$0xff]
        %v191 = vld [vmem:[#allocation5 + $0x70] sm:$0xff]
        %v192 = vld [vmem:[#allocation5 + $0x78] sm:$0xff]
        %v193 = vld [vmem:[#allocation5 + $0x80] sm:$0xff]
        %v194 = vld [vmem:[#allocation5 + $0x88] sm:$0xff]
        %v195 = vld [vmem:[#allocation5 + $0x90] sm:$0xff]
        %v196 = vld [vmem:[#allocation5 + $0x98] sm:$0xff]
        %v197 = vld [vmem:[#allocation5 + $0xa0] sm:$0xff]
        %v198 = vld [vmem:[#allocation5 + $0xa8] sm:$0xff]
        %v199 = vld [vmem:[#allocation5 + $0xb0] sm:$0xff]
        %v200 = vld [vmem:[#allocation5 + $0xb8] sm:$0xff]
        %v201 = vld [vmem:[#allocation5 + $0xc0] sm:$0xff]
        %v202 = vld [vmem:[#allocation5 + $0xc8] sm:$0xff]
        %v203 = vld [vmem:[#allocation5 + $0xd0] sm:$0xff]
        %v204 = vld [vmem:[#allocation5 + $0xd8] sm:$0xff]
        %v205 = vld [vmem:[#allocation5 + $0xe0] sm:$0xff]
        %v206 = vld [vmem:[#allocation5 + $0xe8] sm:$0xff]
        %v207 = vld [vmem:[#allocation5 + $0xf0] sm:$0xff]
        %v208 = vld [vmem:[#allocation5 + $0xf8] sm:$0xff]
        %209 = vmatprep.subr.mxu0 %v208
        %210 = vmatpush1.xpose.msra.mxu0 %v207
        %211 = vmatprep.subr.mxu0 %v206
        %212 = vmatpush1.xpose.msra.mxu0 %v205
        %213 = vmatprep.subr.mxu0 %v204
        %214 = vmatpush1.xpose.msra.mxu0 %v203
        %215 = vmatprep.subr.mxu0 %v202
        %216 = vmatpush1.xpose.msra.mxu0 %v201
        %217 = vmatprep.subr.mxu0 %v200
        %218 = vmatpush1.xpose.msra.mxu0 %v199
        %219 = vmatprep.subr.mxu0 %v198
        %220 = vmatpush1.xpose.msra.mxu0 %v197
        %221 = vmatprep.subr.mxu0 %v196
        %222 = vmatpush1.xpose.msra.mxu0 %v195
        %223 = vmatprep.subr.mxu0 %v194
        %224 = vmatpush1.xpose.msra.mxu0 %v193
        %225 = vmatprep.subr.mxu0 %v192
        %226 = vmatpush1.xpose.msra.mxu0 %v191
        %227 = vmatprep.subr.mxu0 %v190
        %228 = vmatpush1.xpose.msra.mxu0 %v189
        %229 = vmatprep.subr.mxu0 %v188
        %230 = vmatpush1.xpose.msra.mxu0 %v187
        %231 = vmatprep.subr.mxu0 %v186
        %232 = vmatpush1.xpose.msra.mxu0 %v185
        %233 = vmatprep.subr.mxu0 %v184
        %234 = vmatpush1.xpose.msra.mxu0 %v183
        %235 = vmatprep.subr.mxu0 %v182
        %236 = vmatpush1.xpose.msra.mxu0 %v181
        %237 = vmatprep.subr.mxu0 %v180
        %238 = vmatpush1.xpose.msra.mxu0 %v179
        %239 = vmatprep.subr.mxu0 %v178
        %240 = vmatpush1.xpose.msra.mxu0 %v177
        %241 = vmatprep.subr.mxu0 0.0
        %242 = vmatpush2.xpose.msra.mxu0 0.0
        %243 = vmatprep.subr.mxu0 0.0
        %244 = vmatpush2.xpose.msra.mxu0 0.0
        %245 = vmatprep.subr.mxu0 0.0
        %246 = vmatpush2.xpose.msra.mxu0 0.0
        %247 = vmatprep.subr.mxu0 0.0
        %248 = vmatpush2.xpose.msra.mxu0 0.0
        %249 = vmatprep.subr.mxu0 0.0
        %250 = vmatpush2.xpose.msra.mxu0 0.0
        %251 = vmatprep.subr.mxu0 0.0
        %252 = vmatpush2.xpose.msra.mxu0 0.0
        %253 = vmatprep.subr.mxu0 0.0
        %254 = vmatpush2.xpose.msra.mxu0 0.0
        %255 = vmatprep.subr.mxu0 0.0
        %256 = vmatpush2.xpose.msra.mxu0 0.0
        %257 = vmatprep.subr.mxu0 0.0
        %258 = vmatpush2.xpose.msra.mxu0 0.0
        %259 = vmatprep.subr.mxu0 0.0
        %260 = vmatpush2.xpose.msra.mxu0 0.0
        %261 = vmatprep.subr.mxu0 0.0
        %262 = vmatpush2.xpose.msra.mxu0 0.0
        %263 = vmatprep.subr.mxu0 0.0
        %264 = vmatpush2.xpose.msra.mxu0 0.0
        %265 = vmatprep.subr.mxu0 0.0
        %266 = vmatpush2.xpose.msra.mxu0 0.0
        %267 = vmatprep.subr.mxu0 0.0
        %268 = vmatpush2.xpose.msra.mxu0 0.0
        %269 = vmatprep.subr.mxu0 0.0
        %270 = vmatpush2.xpose.msra.mxu0 0.0
        %271 = vmatprep.subr.mxu0 0.0
        %272 = vmatpush2.xpose.msra.mxu0 0.0
        %273 = vmatprep.mubr.f32.mxu0 %v176
        %274 = vmatmul.mubr.f32.gmra.mxu0 %v175
        %v275 = vpop.f32.mrf.mxu0
        %v276 = vadd.f32 0.0, %v275
        %v277 = vpop.f32.mrf.mxu0
        %278 = vdwg.mxu0
        %279 = vst [vmem:[%s174] sm:$0xff] %v276
        %s280 = sand.u32 %s75, 1
        %s281 = scalar_lea.sflag [#allocation4], %s280
        %s282 = sand.u32 %s75, 1
        %s283 = smul.addr %s282, 8
        %s284 = scalar_lea.vmem [#allocation7], %s283
        // Predicated region
        $region37: #{tpu_custom_call.1} parent=27 // pred_check
          %p285 = pneg %p85
        $region38: #{tpu_custom_call.1} parent=27 // pred_check_branch
          %287 = sbr.rel (%p285) target = $region40
        $region39: #{tpu_custom_call.1} parent=27 // pred_region
          %s289 = ssub.s32 128, 128
          %290 = vsyncadd %s281, %s289
          %s291 = smul.addr %s20, 128
          %s292 = scalar_lea.hbm %s2, %s291
          %s294 = sshll.u32 %s284, 4
          %s295 = int_to_ptr.vmem [resolvable:$true] %s294
          %297 = dma.vmem_to_hbm [thread:$0]  %s295, 128, %s292, %s281
        $region40: #{tpu_custom_call.1} parent=27 // pred_fallthru
          _
      $region28: #{tpu_custom_call.1} parent=5 // pred_fallthru
        _
      %p298 = scmp.le.s32.totalorder 2, %s15
      // Predicated region
      $region41: #{tpu_custom_call.1} parent=5 // pred_check
        %p299 = pneg %p298
      $region42: #{tpu_custom_call.1} parent=5 // pred_check_branch
        %301 = sbr.rel (%p299) target = $region44
      $region43: #{tpu_custom_call.1} parent=5 // pred_region
        %s302 = ssub.s32 %s15, 2
        // Predicated region
        $region45: #{tpu_custom_call.1} parent=43 // pred_check
          %p303 = pneg %p91
        $region46: #{tpu_custom_call.1} parent=43 // pred_check_branch
          %305 = sbr.rel (%p303) target = $region48
        $region47: #{tpu_custom_call.1} parent=43 // pred_region
          %s306 = sand.u32 %s76, 1
          %s307 = scalar_lea.sflag [#allocation4], %s306
          %s308 = sand.u32 %s76, 1
          %s309 = smul.addr %s308, 8
          %s310 = scalar_lea.vmem [#allocation7], %s309
          %311 = dma.done %s307, 128
        $region48: #{tpu_custom_call.1} parent=43 // pred_fallthru
          _
      $region44: #{tpu_custom_call.1} parent=5 // pred_fallthru
        _
    $region6: #{tpu_custom_call.1} parent=1 // loop_footer
      %s19 = sadd.s32 1, %s15
    $region7: #{tpu_custom_call.1} parent=1 // loop_footer_branch
      %14 = sbr.rel target = $region3
    $region8: #{tpu_custom_call.1} parent=1 // loop_exit
      _
    %312 = vsyncpa [#allocation3], 1
    %s313 = scalar_lea.sflag [#allocation3], 1
    %314 = vsyncpa %s313, 1
    %315 = vsyncpa [#allocation6], 1
    %316 = vsyncpa [#allocation4], 1
    %s317 = scalar_lea.sflag [#allocation4], 1
    %318 = vsyncpa %s317, 1

</llo_original>
